<compile_context>
chip_gen: v5e
topology: v5e:2x2
jax: 0.10.0
libtpu: 0.0.40
codegen_flags: <defaults>
</compile_context>

<pallas_src>
import functools

import jax
import jax.numpy as jnp
from jax import lax
from jax.experimental import pallas as pl
from jax.experimental.pallas import tpu as pltpu


def _round_up(n: int, m: int) -> int:
    return ((n + m - 1) // m) * m


# ------------------------------ Pallas kernel ------------------------------ #

def moe_grouped_kernel(block_expert_ref, nvalid_ref,   # scalar prefetch (SMEM)
                       x_ref,       # (block_m, D)     grouped/padded token rows
                       w13_ref,     # (1, 1, 2*tI, D)  fused [w1; w3] tile of this block's expert
                       w2_ref,      # (1, D, tI)       w2 tile of this block's expert
                       out_ref,     # (block_m, D)
                       acc_ref):    # (block_m, D) fp32 scratch accumulator
    del block_expert_ref            # only consumed by the index_maps
    b = pl.program_id(0)            # token-block axis (parallel)
    i = pl.program_id(1)            # inter-dim tile axis (reduction, innermost)
    n_i = pl.num_programs(1)
    t_i = w2_ref.shape[2]

    @pl.when(i == 0)
    def _():
        acc_ref[...] = jnp.zeros_like(acc_ref)

    # Skip fully-padded (inactive) trailing blocks.
    @pl.when(b < nvalid_ref[0])
    def _():
        x = x_ref[...]                                          # (bm, D)
        w13 = w13_ref[0, 0]                                     # (2*tI, D)
        # h = x @ [w1; w3].T, contracting last axes (no in-kernel transpose).
        h = lax.dot_general(x, w13, (((1,), (1,)), ((), ())),
                            preferred_element_type=jnp.float32)  # (bm, 2*tI)
        h1 = h[:, :t_i]
        h3 = h[:, t_i:]
        act = (h1 * jax.nn.sigmoid(h1)) * h3                    # silu(w1 x) * (w3 x), fp32
        w2 = w2_ref[0]                                          # (D, tI)
        acc_ref[...] += lax.dot_general(act.astype(w2.dtype), w2,
                                        (((1,), (1,)), ((), ())),
                                        preferred_element_type=jnp.float32)

    @pl.when(i == n_i - 1)
    def _():
        out_ref[...] = acc_ref[...].astype(out_ref.dtype)


# ------------------------------ host wrappers ------------------------------ #

def grouped_expert_mlp(x_rows, w13, w2_all, block_expert, nvalid, *, block_m):
    """Grouped SwiGLU expert GEMM over expert-sorted, block-padded token rows.

    x_rows:       (A_pad, D)            token rows grouped by expert, padded per group
    w13:          (E_all, nI, 2*tI, D)  fused / tile-interleaved w1, w3 (nn.Linear layout)
    w2_all:       (E_all, D, I)
    block_expert: (num_blocks,) int32   expert id owning each row-block
    nvalid:       (1,) int32            number of non-padding row-blocks
    """
    a_pad, d = x_rows.shape
    _, n_i, two_ti, _ = w13.shape
    t_i = two_ti // 2
    num_blocks = a_pad // block_m

    return pl.pallas_call(
        moe_grouped_kernel,
        out_shape=jax.ShapeDtypeStruct((a_pad, d), jnp.float32),
        grid_spec=pltpu.PrefetchScalarGridSpec(
            num_scalar_prefetch=2,
            grid=(num_blocks, n_i),
            in_specs=[
                pl.BlockSpec((block_m, d), lambda b, i, be, nv: (b, 0)),
                pl.BlockSpec((1, 1, 2 * t_i, d),
                             lambda b, i, be, nv: (be[b], i, 0, 0)),
                pl.BlockSpec((1, d, t_i),
                             lambda b, i, be, nv: (be[b], 0, i)),
            ],
            out_specs=pl.BlockSpec((block_m, d), lambda b, i, be, nv: (b, 0)),
            scratch_shapes=[pltpu.VMEM((block_m, d), jnp.float32)],
        ),
        compiler_params=pltpu.CompilerParams(
            # Token-block axis is independent work -> split across v7x's 2 TCs;
            # inter-dim tiles reduce into the fp32 scratch -> "arbitrary".
            dimension_semantics=("parallel", "arbitrary")),
    )(block_expert, nvalid, x_rows, w13, w2_all)


def moe_forward(x, params, *, topk, route_scale, n_shared, block_m=8):
    """MoE forward, x: (B, S, D).

    Matches the PyTorch module for score_func='softmax', n_expert_groups == 1,
    no gate bias, single device (no data_reduce)."""
    shape = x.shape
    D = shape[-1]
    xt = x.reshape(-1, D)                                   # (T, D) tokens-major
    T = xt.shape[0]
    dtype = x.dtype

    w1, w3, w2 = params["w1"], params["w3"], params["w2"]   # (E,I,D), (E,I,D), (E,D,I)
    w1s, w3s, w2s = params["w1s"], params["w3s"], params["w2s"]
    E, I, _ = w1.shape
    E_all = E + n_shared

    # ---- Gate: tiny (T, E) matmul + softmax + top-k in plain JAX (per review) ----
    logits = xt @ params["gate_w"].T
    scores = jax.nn.softmax(logits.astype(jnp.float32), axis=-1)
    _, indices = lax.top_k(scores, topk)                                   # (T, k)
    weights = jnp.take_along_axis(scores, indices, axis=1) * route_scale   # fp32
    weights = weights.astype(dtype)                                        # weights.type_as(x)

    # ---- Build (token, expert, weight) assignments: top-k routed + shared ----
    # The shared-experts MLP (inter dim n_shared*I) is exactly n_shared extra
    # experts of inter dim I that every token is routed to with weight 1.0.
    tok = jnp.arange(T, dtype=jnp.int32)
    tok_all = jnp.concatenate([jnp.repeat(tok, topk), jnp.repeat(tok, n_shared)])
    exp_all = jnp.concatenate([
        indices.astype(jnp.int32).reshape(-1),
        jnp.tile(E + jnp.arange(n_shared, dtype=jnp.int32), T),
    ])
    w_all = jnp.concatenate([
        weights.astype(jnp.float32).reshape(-1),
        jnp.ones((T * n_shared,), jnp.float32),
    ])
    A = T * (topk + n_shared)

    # ---- Sort assignments by expert, pad each expert group to block_m rows ----
    order = jnp.argsort(exp_all)
    e_s = exp_all[order]
    t_s = tok_all[order]
    w_s = w_all[order]

    counts = jnp.bincount(exp_all, length=E_all).astype(jnp.int32)   # (E_all,)
    start = jnp.cumsum(counts) - counts                              # exclusive offsets
    counts_pad = ((counts + block_m - 1) // block_m) * block_m
    pstart = jnp.cumsum(counts_pad) - counts_pad
    pend = jnp.cumsum(counts_pad)

    A_pad = _round_up(A, block_m) + E_all * block_m                  # static worst case
    num_blocks = A_pad // block_m

    rank = jnp.arange(A, dtype=jnp.int32) - start[e_s]               # rank within group
    pos = pstart[e_s] + rank                                         # unique padded position

    t_pad = jnp.zeros((A_pad,), jnp.int32).at[pos].set(t_s)          # padding -> token 0
    w_pad = jnp.zeros((A_pad,), jnp.float32).at[pos].set(w_s)        # padding -> weight 0

    block_start = jnp.arange(num_blocks, dtype=jnp.int32) * block_m
    block_expert = jnp.searchsorted(pend, block_start, side="right").astype(jnp.int32)
    block_expert = jnp.minimum(block_expert, E_all - 1)              # clamp inactive blocks
    nvalid = jnp.reshape(pend[-1] // block_m, (1,)).astype(jnp.int32)

    # ---- Dispatch: gather token rows per assignment ----
    x_rows = xt[t_pad]                                               # (A_pad, D)

    # ---- One-time weight layout prep (routed + shared in one tensor) ----
    w1_all = jnp.concatenate([w1, w1s.reshape(n_shared, I, D)], axis=0)       # (E_all, I, D)
    w3_all = jnp.concatenate([w3, w3s.reshape(n_shared, I, D)], axis=0)
    w2_all = jnp.concatenate(
        [w2, jnp.transpose(w2s.reshape(D, n_shared, I), (1, 0, 2))], axis=0)  # (E_all, D, I)

    t_i = min(I, 512)                 # inter-dim tile (full I for the toy config)
    assert I % t_i == 0
    n_i = I // t_i
    # Fused + tile-interleaved [w1; w3]: (E_all, nI, 2*tI, D); one first matmul
    # per grid step with lane width 2*tI.
    w13 = jnp.concatenate(
        [w1_all.reshape(E_all, n_i, t_i, D), w3_all.reshape(E_all, n_i, t_i, D)],
        axis=2)

    # ---- Single Pallas kernel: grouped GEMM for routed + shared experts ----
    out_rows = grouped_expert_mlp(x_rows, w13, w2_all, block_expert, nvalid,
                                  block_m=block_m)                   # (A_pad, D) fp32

    # ---- Un-permute: fp32 scatter-add of weighted expert outputs per token ----
    y = jnp.zeros((T, D), jnp.float32).at[t_pad].add(out_rows * w_pad[:, None])
    return y.astype(dtype).reshape(shape), indices, weights


# --------------------------------- main ------------------------------------ #

if __name__ == "__main__":
    # Small config consistent with the module's forward:
    B, S = 2, 8                # -> T = 16 tokens
    D = 32                     # args.dim
    I = 32                     # args.moe_inter_dim
    E = 8                      # args.n_routed_experts
    TOPK = 2                   # args.n_activated_experts
    N_SHARED = 2               # args.n_shared_experts -> shared inter = 64
    ROUTE_SCALE = 1.0
    I_SHARED = N_SHARED * I

    key = jax.random.PRNGKey(0)
    ks = jax.random.split(key, 8)
    scale = 0.05
    params = {
        "gate_w": jax.random.normal(ks[0], (E, D), jnp.float32) * scale,
        "w1":     jax.random.normal(ks[1], (E, I, D), jnp.float32) * scale,
        "w3":     jax.random.normal(ks[2], (E, I, D), jnp.float32) * scale,
        "w2":     jax.random.normal(ks[3], (E, D, I), jnp.float32) * scale,
        "w1s":    jax.random.normal(ks[4], (I_SHARED, D), jnp.float32) * scale,
        "w3s":    jax.random.normal(ks[5], (I_SHARED, D), jnp.float32) * scale,
        "w2s":    jax.random.normal(ks[6], (D, I_SHARED), jnp.float32) * scale,
    }
    x = jax.random.normal(ks[7], (B, S, D), jnp.float32)

    fwd = jax.jit(functools.partial(moe_forward, topk=TOPK, route_scale=ROUTE_SCALE,
                                    n_shared=N_SHARED, block_m=8))
    out, indices, weights = fwd(x, params)
    out = jax.block_until_ready(out)

    # ---- pure-JAX reference (mirrors the PyTorch forward) ----
    def ref_forward(x, p):
        xt = x.reshape(-1, D)
        logits = xt @ p["gate_w"].T
        scores = jax.nn.softmax(logits.astype(jnp.float32), axis=-1)
        _, idx = jax.lax.top_k(scores, TOPK)
        w = (jnp.take_along_axis(scores, idx, axis=1) * ROUTE_SCALE).astype(xt.dtype)
        y = jnp.zeros_like(xt)
        for e in range(E):
            h1 = xt @ p["w1"][e].T
            h3 = xt @ p["w3"][e].T
            oe = ((h1 * jax.nn.sigmoid(h1)) * h3) @ p["w2"][e].T
            we = jnp.sum(jnp.where(idx == e, w, 0.0), axis=1, keepdims=True)
            y = y + oe * we
        h1 = xt @ p["w1s"].T
        h3 = xt @ p["w3s"].T
        z = ((h1 * jax.nn.sigmoid(h1)) * h3) @ p["w2s"].T
        return (y + z).reshape(x.shape)

    ref = ref_forward(x, params)
    assert out.shape == x.shape and out.dtype == x.dtype
    err = jnp.max(jnp.abs(out - ref))
    assert jnp.allclose(out, ref, atol=5e-4, rtol=5e-4), f"mismatch vs reference, max abs err={err}"

    print("KERNEL_OK")
</pallas_src>

<mosaic_0001>
module attributes {stable_mosaic.version = 11 : i64} {
  func.func @moe_grouped_kernel(%arg0: i32, %arg1: i32, %arg2: memref<18xi32, #tpu.memory_space<smem>>, %arg3: memref<1xi32, #tpu.memory_space<smem>>, %arg4: memref<8x32xf32, #tpu.memory_space<vmem>>, %arg5: memref<1x1x64x32xf32, #tpu.memory_space<vmem>>, %arg6: memref<1x32x32xf32, #tpu.memory_space<vmem>>, %arg7: memref<8x32xf32, #tpu.memory_space<vmem>>, %arg8: memref<8x32xf32, #tpu.memory_space<vmem>>) attributes {dimension_semantics = [#tpu.dimension_semantics<parallel>, #tpu.dimension_semantics<arbitrary>], iteration_bounds = array<i64: 18, 1>, scalar_prefetch = 2 : i64, scratch_operands = 1 : i64, tpu.core_type = #tpu.core_type<tc>, window_params = [{transform_indices = @transform_0, window_bounds = array<i64: 8, 32>}, {transform_indices = @transform_1, window_bounds = array<i64: 1, 1, 64, 32>}, {transform_indices = @transform_2, window_bounds = array<i64: 1, 32, 32>}, {transform_indices = @transform_3, window_bounds = array<i64: 8, 32>}]} {
    %c0_i32 = arith.constant 0 : i32
    %0 = arith.cmpi eq, %arg1, %c0_i32 : i32
    %1 = arith.extui %0 : i1 to i32
    %c0_i32_0 = arith.constant 0 : i32
    %2 = arith.cmpi ne, %1, %c0_i32_0 : i32
    scf.if %2 {
      %cst = arith.constant 0.000000e+00 : f32
      %10 = vector.broadcast %cst : f32 to vector<8x32xf32>
      %c0_4 = arith.constant 0 : index
      %c0_5 = arith.constant 0 : index
      %11 = vector.load %arg8[%c0_4, %c0_5] : memref<8x32xf32, #tpu.memory_space<vmem>>, vector<8x32xf32>
      tpu.vector_store %arg8[%c0_4, %c0_5], %10 {strides = array<i32>} : memref<8x32xf32, #tpu.memory_space<vmem>>, vector<8x32xf32>,
    } else {
    }
    %c0 = arith.constant 0 : index
    %3 = memref.load %arg3[%c0] : memref<1xi32, #tpu.memory_space<smem>>
    %4 = arith.cmpi slt, %arg0, %3 : i32
    %5 = arith.extui %4 : i1 to i32
    %c0_i32_1 = arith.constant 0 : i32
    %6 = arith.cmpi ne, %5, %c0_i32_1 : i32
    scf.if %6 {
      %c0_4 = arith.constant 0 : index
      %c0_5 = arith.constant 0 : index
      %10 = vector.load %arg4[%c0_4, %c0_5] : memref<8x32xf32, #tpu.memory_space<vmem>>, vector<8x32xf32>
      %c0_6 = arith.constant 0 : index
      %c0_7 = arith.constant 0 : index
      %c0_8 = arith.constant 0 : index
      %c0_9 = arith.constant 0 : index
      %11 = vector.load %arg5[%c0_6, %c0_7, %c0_8, %c0_9] : memref<1x1x64x32xf32, #tpu.memory_space<vmem>>, vector<1x1x64x32xf32>
      %12 = vector.shape_cast %11 : vector<1x1x64x32xf32> to vector<64x32xf32>
      %cst = arith.constant dense<0.000000e+00> : vector<8x64xf32>
      %13 = tpu.matmul %10, %12, %cst {dimension_numbers = #tpu.dot_dimension_numbers<[1], [1], [0], [0], [0, 0, 1, 0], [], []>} : vector<8x32xf32>, vector<64x32xf32>, vector<8x64xf32> -> vector<8x64xf32>
      %14 = vector.extract_strided_slice %13 {offsets = [0, 0], sizes = [8, 32], strides = [1, 1]} : vector<8x64xf32> to vector<8x32xf32>
      %15 = vector.extract_strided_slice %13 {offsets = [0, 32], sizes = [8, 32], strides = [1, 1]} : vector<8x64xf32> to vector<8x32xf32>
      %16 = arith.negf %14 : vector<8x32xf32>
      %17 = math.exp %16 : vector<8x32xf32>
      %cst_10 = arith.constant 1.000000e+00 : f32
      %18 = vector.broadcast %cst_10 : f32 to vector<8x32xf32>
      %19 = arith.addf %18, %17 : vector<8x32xf32>
      %20 = arith.divf %18, %19 : vector<8x32xf32>
      %21 = arith.mulf %14, %20 : vector<8x32xf32>
      %22 = arith.mulf %21, %15 : vector<8x32xf32>
      %c0_11 = arith.constant 0 : index
      %c0_12 = arith.constant 0 : index
      %c0_13 = arith.constant 0 : index
      %23 = vector.load %arg6[%c0_11, %c0_12, %c0_13] : memref<1x32x32xf32, #tpu.memory_space<vmem>>, vector<1x32x32xf32>
      %24 = vector.shape_cast %23 : vector<1x32x32xf32> to vector<32x32xf32>
      %c0_14 = arith.constant 0 : index
      %c0_15 = arith.constant 0 : index
      %25 = vector.load %arg8[%c0_14, %c0_15] : memref<8x32xf32, #tpu.memory_space<vmem>>, vector<8x32xf32>
      %cst_16 = arith.constant dense<0.000000e+00> : vector<8x32xf32>
      %26 = tpu.matmul %22, %24, %cst_16 {dimension_numbers = #tpu.dot_dimension_numbers<[1], [1], [0], [0], [0, 0, 1, 0], [], []>} : vector<8x32xf32>, vector<32x32xf32>, vector<8x32xf32> -> vector<8x32xf32>
      %27 = arith.addf %25, %26 : vector<8x32xf32>
      %c0_17 = arith.constant 0 : index
      %c0_18 = arith.constant 0 : index
      %28 = vector.load %arg8[%c0_17, %c0_18] : memref<8x32xf32, #tpu.memory_space<vmem>>, vector<8x32xf32>
      tpu.vector_store %arg8[%c0_17, %c0_18], %27 {strides = array<i32>} : memref<8x32xf32, #tpu.memory_space<vmem>>, vector<8x32xf32>,
    } else {
    }
    %c0_i32_2 = arith.constant 0 : i32
    %7 = arith.cmpi eq, %arg1, %c0_i32_2 : i32
    %8 = arith.extui %7 : i1 to i32
    %c0_i32_3 = arith.constant 0 : i32
    %9 = arith.cmpi ne, %8, %c0_i32_3 : i32
    scf.if %9 {
      %c0_4 = arith.constant 0 : index
      %c0_5 = arith.constant 0 : index
      %10 = vector.load %arg8[%c0_4, %c0_5] : memref<8x32xf32, #tpu.memory_space<vmem>>, vector<8x32xf32>
      %c0_6 = arith.constant 0 : index
      %c0_7 = arith.constant 0 : index
      %11 = vector.load %arg7[%c0_6, %c0_7] : memref<8x32xf32, #tpu.memory_space<vmem>>, vector<8x32xf32>
      tpu.vector_store %arg7[%c0_6, %c0_7], %10 {strides = array<i32>} : memref<8x32xf32, #tpu.memory_space<vmem>>, vector<8x32xf32>,
    } else {
    }
    return
  }
  func.func @transform_0(%arg0: i32, %arg1: i32, %arg2: memref<18xi32, #tpu.memory_space<smem>>, %arg3: memref<1xi32, #tpu.memory_space<smem>>) -> (i32, i32) {
    %c0_i32 = arith.constant 0 : i32
    %c0_i32_0 = arith.constant 0 : i32
    return %arg0, %c0_i32 : i32, i32
  }
  func.func @transform_1(%arg0: i32, %arg1: i32, %arg2: memref<18xi32, #tpu.memory_space<smem>>, %arg3: memref<1xi32, #tpu.memory_space<smem>>) -> (i32, i32, i32, i32) {
    %0 = arith.index_cast %arg0 : i32 to index
    %1 = memref.load %arg2[%0] : memref<18xi32, #tpu.memory_space<smem>>
    %c0_i32 = arith.constant 0 : i32
    %c0_i32_0 = arith.constant 0 : i32
    %c0_i32_1 = arith.constant 0 : i32
    return %1, %arg1, %c0_i32, %c0_i32_0 : i32, i32, i32, i32
  }
  func.func @transform_2(%arg0: i32, %arg1: i32, %arg2: memref<18xi32, #tpu.memory_space<smem>>, %arg3: memref<1xi32, #tpu.memory_space<smem>>) -> (i32, i32, i32) {
    %0 = arith.index_cast %arg0 : i32 to index
    %1 = memref.load %arg2[%0] : memref<18xi32, #tpu.memory_space<smem>>
    %c0_i32 = arith.constant 0 : i32
    %c0_i32_0 = arith.constant 0 : i32
    return %1, %c0_i32, %arg1 : i32, i32, i32
  }
  func.func @transform_3(%arg0: i32, %arg1: i32, %arg2: memref<18xi32, #tpu.memory_space<smem>>, %arg3: memref<1xi32, #tpu.memory_space<smem>>) -> (i32, i32) {
    %c0_i32 = arith.constant 0 : i32
    %c0_i32_0 = arith.constant 0 : i32
    return %arg0, %c0_i32 : i32, i32
  }
}

</mosaic_0001>

<llo_original>
// kernel: tile.8
$region0: #{tile.8}
  #allocation0 [shape = 's32[1]{0}', space=sflag, size = 0x4, scoped, tag = 'scoped memory for tile.8']
  %s0 = inlined_call_operand.vmem [shape: s32[2], index: 0, kind: input, shape index: {}]
  %s1 = inlined_call_operand.vmem [shape: s32[16,2], index: 1, kind: output, shape index: {}]
  // Predicated region
  $region2: #{tile.8} parent=0 // pred_check
    _
  $region3: #{tile.8} parent=0 // pred_check_branch
    %3 = sbr.rel (0) target = $region5
  $region4: #{tile.8} parent=0 // pred_region
    _
  $region5: #{tile.8} parent=0 // pred_fallthru
    _
  %v4 = vld [vmem:[%s0] ss:$0 sm:$0xff]
  %5 = vst [vmem:[%s1] sm:$0xff] %v4
  %s6 = scalar_lea.vmem %s1, 8
  %7 = vst [vmem:[%s6] sm:$0xff] %v4

// kernel: custom-call.2
$region0: #{custom-call.2}
  %s0 = inlined_call_operand.vmem [shape: u32[18], index: 0, kind: output, shape index: {}]

// kernel: moe_forward.1
$region0: #{moe_forward.1}
  #allocation0 [shape = 'u32[]', space=smem, size = 0x4, offset = 0x4, fixed_abs, tag = 'smem constant byte address 0x4 - core index']
  #allocation1 [shape = 'u32[72,128]{1,0:T(1,128)}', space=vmem, size = 0x9000, scoped, tag = 'internal scratch']
  #allocation2 [shape = 'f32[8,32]{1,0:T(8,128)}', space=vmem, size = 0x1000, scoped, tag = 'scratch operand']
  #allocation3 [shape = 's32[1]{0}', space=sflag, size = 0x4, scoped, tag = 'scoped memory for moe_forward.1']
  #allocation4 [shape = 'u8[512]{0}', space=smem, size = 0x200, scoped, tag = 'prefetched SMEM operand 0']
  #allocation5 [shape = 's32[1]{0:T(128)S(6)}', space=smem, size = 0x200, scoped, tag = 'prefetched SMEM operand 1']
  %s0 = inlined_call_operand.vmem [shape: s32[18], index: 0, kind: input, shape index: {}]
  %s1 = inlined_call_operand.<no memory space> [shape: s32[1], index: 1, kind: input, shape index: {}]
  %s2 = inlined_call_operand.vmem [shape: f32[144,32], index: 2, kind: input, shape index: {}]
  %s3 = inlined_call_operand.vmem [shape: f32[10,1,64,32], index: 3, kind: input, shape index: {}]
  %s4 = inlined_call_operand.vmem [shape: f32[10,32,32], index: 4, kind: input, shape index: {}]
  %s5 = inlined_call_operand.vmem [shape: f32[144,32], index: 5, kind: output, shape index: {}]
  %s6 = sld [smem:[#allocation0]]
  $region57: #{moe_forward.1} parent=0
    _
  %s8 = ssub.s32 1, %s6
  %s9 = scalar_select 0, %s8, %s6
  %s11 = sshll.u32 %s0, 4
  %s12 = int_to_ptr.vmem [resolvable:$true] %s11
  %14 = dma.vmem_to_smem %s12, 16, [#allocation4], [#allocation3]
  %15 = sst [smem:[#allocation5]] %s1
  %17 = dma.done [#allocation3], 16
  %18 = sfence
  loop: start=0, step=1, limit=20
  $region2: #{moe_forward.1} parent=0 // loop_pre_header
    _
  $region3: #{moe_forward.1} parent=0 // loop_header
    %s20 = sphi 0, %s24
    %p21 = scmp.ge.s32.totalorder %s20, 20
    %s27 = sphi 0, %s39
    %s28 = sphi 0, %s35
    %s29 = sphi 0, %s27
    %s30 = sphi 0, %s28
    %s31 = sphi 0, %s29
    %s32 = sphi 0, %s30
    %s42 = sphi 0, %s44
    %s45 = sphi 0, %s42
    %s46 = sphi 0, %s45
    %s62 = sphi 0, %s46
    %s72 = sphi 0, %s74
    %s75 = sphi 0, %s72
    %s76 = sphi 0, %s75
    %s92 = sphi 0, %s76
    %s102 = sphi 0, %s104
    %s105 = sphi 0, %s102
    %s106 = sphi 0, %s105
    %s122 = sphi 0, %s106
    %s128 = sphi 0, %s130
    %s131 = sphi 0, %s128
    %s132 = sphi 0, %s131
    %s148 = sphi 0, %s132
  $region4: #{moe_forward.1} parent=0 // loop_header_branch
    %23 = sbr.rel (%p21) target = $region8
  $region5: #{moe_forward.1} parent=0 // loop_body
    %s25 = ssub.s32 %s20, 1
    %s26 = ssub.s32 %s20, 2
    %s33 = sadd.s32 1, %s28
    %p34 = scmp.ge.s32.totalorder %s33, 1
    %s35 = scalar_select %p34, 0, %s33
    %s36 = sadd.s32 1, %s27
    %s37 = scalar_select %p34, %s36, %s27
    %p38 = scmp.ge.s32.totalorder %s37, 18
    %s39 = scalar_select %p38, 0, %s37
    %s40 = ssub.s32 %s27, %s39
    %p41 = scmp.eq.s32.totalorder %s40, 0
    %s43 = sadd.s32 %s42, 1
    %s44 = scalar_select %p41, %s42, %s43
    %p47 = pneg %p41
    %p48 = scmp.eq.s32.totalorder %s20, 17
    %p49 = por %p47, %p48
    %p50 = scmp.ne.s32.totalorder %s42, %s45
    %p51 = scmp.eq.s32.totalorder %s20, 0
    %p52 = por %p50, %p51
    %p53 = scmp.ne.s32.totalorder %s42, %s45
    %p54 = scmp.eq.s32.totalorder %s25, 17
    %p55 = por %p53, %p54
    %p56 = scmp.ne.s32.totalorder %s45, %s46
    %p57 = scmp.eq.s32.totalorder %s25, 0
    %p58 = por %p56, %p57
    %p59 = scmp.ne.s32.totalorder %s45, %s46
    %p60 = scmp.eq.s32.totalorder %s26, 17
    %p61 = por %p59, %p60
    %p63 = scmp.ne.s32.totalorder %s46, %s62
    %p64 = scmp.eq.s32.totalorder %s26, 0
    %p65 = por %p63, %p64
    %s66 = sld [smem:[#allocation4 + %s27]]
    %s67 = sld [smem:[#allocation4 + %s39]]
    %s68 = ssub.s32 %s66, %s67
    %s69 = ssub.s32 %s28, %s35
    %s70 = sor.u32 %s68, %s69
    %p71 = scmp.eq.s32.totalorder %s70, 0
    %s73 = sadd.s32 %s72, 1
    %s74 = scalar_select %p71, %s72, %s73
    %p77 = pneg %p71
    %p78 = scmp.eq.s32.totalorder %s20, 17
    %p79 = por %p77, %p78
    %p80 = scmp.ne.s32.totalorder %s72, %s75
    %p81 = scmp.eq.s32.totalorder %s20, 0
    %p82 = por %p80, %p81
    %p83 = scmp.ne.s32.totalorder %s72, %s75
    %p84 = scmp.eq.s32.totalorder %s25, 17
    %p85 = por %p83, %p84
    %p86 = scmp.ne.s32.totalorder %s75, %s76
    %p87 = scmp.eq.s32.totalorder %s25, 0
    %p88 = por %p86, %p87
    %p89 = scmp.ne.s32.totalorder %s75, %s76
    %p90 = scmp.eq.s32.totalorder %s26, 17
    %p91 = por %p89, %p90
    %p93 = scmp.ne.s32.totalorder %s76, %s92
    %p94 = scmp.eq.s32.totalorder %s26, 0
    %p95 = por %p93, %p94
    %s96 = sld [smem:[#allocation4 + %s27]]
    %s97 = sld [smem:[#allocation4 + %s39]]
    %s98 = ssub.s32 %s96, %s97
    %s99 = ssub.s32 %s28, %s35
    %s100 = sor.u32 %s98, %s99
    %p101 = scmp.eq.s32.totalorder %s100, 0
    %s103 = sadd.s32 %s102, 1
    %s104 = scalar_select %p101, %s102, %s103
    %p107 = pneg %p101
    %p108 = scmp.eq.s32.totalorder %s20, 17
    %p109 = por %p107, %p108
    %p110 = scmp.ne.s32.totalorder %s102, %s105
    %p111 = scmp.eq.s32.totalorder %s20, 0
    %p112 = por %p110, %p111
    %p113 = scmp.ne.s32.totalorder %s102, %s105
    %p114 = scmp.eq.s32.totalorder %s25, 17
    %p115 = por %p113, %p114
    %p116 = scmp.ne.s32.totalorder %s105, %s106
    %p117 = scmp.eq.s32.totalorder %s25, 0
    %p118 = por %p116, %p117
    %p119 = scmp.ne.s32.totalorder %s105, %s106
    %p120 = scmp.eq.s32.totalorder %s26, 17
    %p121 = por %p119, %p120
    %p123 = scmp.ne.s32.totalorder %s106, %s122
    %p124 = scmp.eq.s32.totalorder %s26, 0
    %p125 = por %p123, %p124
    %s126 = ssub.s32 %s27, %s39
    %p127 = scmp.eq.s32.totalorder %s126, 0
    %s129 = sadd.s32 %s128, 1
    %s130 = scalar_select %p127, %s128, %s129
    %p133 = pneg %p127
    %p134 = scmp.eq.s32.totalorder %s20, 17
    %p135 = por %p133, %p134
    %p136 = scmp.ne.s32.totalorder %s128, %s131
    %p137 = scmp.eq.s32.totalorder %s20, 0
    %p138 = por %p136, %p137
    %p139 = scmp.ne.s32.totalorder %s128, %s131
    %p140 = scmp.eq.s32.totalorder %s25, 17
    %p141 = por %p139, %p140
    %p142 = scmp.ne.s32.totalorder %s131, %s132
    %p143 = scmp.eq.s32.totalorder %s25, 0
    %p144 = por %p142, %p143
    %p145 = scmp.ne.s32.totalorder %s131, %s132
    %p146 = scmp.eq.s32.totalorder %s26, 17
    %p147 = por %p145, %p146
    %p149 = scmp.ne.s32.totalorder %s132, %s148
    %p150 = scmp.eq.s32.totalorder %s26, 0
    %p151 = por %p149, %p150
    %p152 = scmp.le.s32.totalorder 1, %s20
    %p153 = scmp.lt.s32.totalorder %s20, 19
    %p154 = pnand %p152, %p153
    %p155 = pneg %p154
    // Predicated region
    $region9: #{moe_forward.1} parent=5 // pred_check
      _
    $region10: #{moe_forward.1} parent=5 // pred_check_branch
      %157 = sbr.rel (%p154) target = $region12
    $region11: #{moe_forward.1} parent=5 // pred_region
      %s158 = ssub.s32 %s20, 1
    $region12: #{moe_forward.1} parent=5 // pred_fallthru
      _
    %p159 = scmp.lt.s32.totalorder %s20, 18
    // Predicated region
    $region13: #{moe_forward.1} parent=5 // pred_check
      %p160 = pneg %p159
    $region14: #{moe_forward.1} parent=5 // pred_check_branch
      %162 = sbr.rel (%p160) target = $region16
    $region15: #{moe_forward.1} parent=5 // pred_region
      // Predicated region
      $region17: #{moe_forward.1} parent=15 // pred_check
        %p163 = pneg %p52
      $region18: #{moe_forward.1} parent=15 // pred_check_branch
        %165 = sbr.rel (%p163) target = $region20
      $region19: #{moe_forward.1} parent=15 // pred_region
        %p166 = scmp.lt.s32.totalorder %s27, 17
        %s167 = scalar_select %p166, %s27, 17
        %s168 = smul.addr %s167, 8
        %s169 = scalar_lea.vmem %s2, %s168
      $region20: #{moe_forward.1} parent=15 // pred_fallthru
        _
      // Predicated region
      $region21: #{moe_forward.1} parent=15 // pred_check
        %p170 = pneg %p82
      $region22: #{moe_forward.1} parent=15 // pred_check_branch
        %172 = sbr.rel (%p170) target = $region24
      $region23: #{moe_forward.1} parent=15 // pred_region
        %s173 = sld [smem:[#allocation4 + %s27]]
        %p174 = scmp.lt.s32.totalorder %s173, 9
        %s175 = scalar_select %p174, %s173, 9
        %p176 = scmp.lt.s32.totalorder %s28, 0
        %s177 = scalar_select %p176, %s28, 0
        %s178 = smul.addr %s177, 8
        %s179 = smul.addr %s175, 8
        %s180 = sadd.s32 %s178, %s179
        %s181 = smul.addr %s180, 8
        %s182 = scalar_lea.vmem %s3, %s181
        %s183 = sld [smem:[#allocation4 + %s27]]
      $region24: #{moe_forward.1} parent=15 // pred_fallthru
        _
      // Predicated region
      $region25: #{moe_forward.1} parent=15 // pred_check
        %p184 = pneg %p112
      $region26: #{moe_forward.1} parent=15 // pred_check_branch
        %186 = sbr.rel (%p184) target = $region28
      $region27: #{moe_forward.1} parent=15 // pred_region
        %s187 = sld [smem:[#allocation4 + %s27]]
        %p188 = scmp.lt.s32.totalorder %s187, 9
        %s189 = scalar_select %p188, %s187, 9
        %p190 = scmp.lt.s32.totalorder %s28, 0
        %s191 = scalar_select %p190, %s28, 0
        %s192 = smul.addr %s189, 4
        %s193 = sadd.s32 %s191, %s192
        %s194 = smul.addr %s193, 8
        %s195 = scalar_lea.vmem %s4, %s194
        %s196 = sld [smem:[#allocation4 + %s27]]
      $region28: #{moe_forward.1} parent=15 // pred_fallthru
        _
    $region16: #{moe_forward.1} parent=5 // pred_fallthru
      _
    %p197 = scmp.le.s32.totalorder 1, %s20
    %p198 = scmp.lt.s32.totalorder %s20, 19
    %p199 = pnand %p197, %p198
    %p200 = pneg %p199
    // Predicated region
    $region29: #{moe_forward.1} parent=5 // pred_check
      _
    $region30: #{moe_forward.1} parent=5 // pred_check_branch
      %202 = sbr.rel (%p199) target = $region32
    $region31: #{moe_forward.1} parent=5 // pred_region
      %s203 = ssub.s32 %s20, 1
      %p204 = scmp.lt.s32.totalorder %s29, 17
      %s205 = scalar_select %p204, %s29, 17
      %s206 = smul.addr %s205, 8
      %s207 = scalar_lea.vmem %s2, %s206
      %p208 = pneg %p58
      %p209 = pneg %p55
      %s210 = sld [smem:[#allocation4 + %s29]]
      %p211 = scmp.lt.s32.totalorder %s210, 9
      %s212 = scalar_select %p211, %s210, 9
      %p213 = scmp.lt.s32.totalorder %s30, 0
      %s214 = scalar_select %p213, %s30, 0
      %s215 = smul.addr %s214, 8
      %s216 = smul.addr %s212, 8
      %s217 = sadd.s32 %s215, %s216
      %s218 = smul.addr %s217, 8
      %s219 = scalar_lea.vmem %s3, %s218
      %p220 = pneg %p88
      %p221 = pneg %p85
      %s222 = sld [smem:[#allocation4 + %s29]]
      %p223 = scmp.lt.s32.totalorder %s222, 9
      %s224 = scalar_select %p223, %s222, 9
      %p225 = scmp.lt.s32.totalorder %s30, 0
      %s226 = scalar_select %p225, %s30, 0
      %s227 = smul.addr %s224, 4
      %s228 = sadd.s32 %s226, %s227
      %s229 = smul.addr %s228, 8
      %s230 = scalar_lea.vmem %s4, %s229
      %p231 = pneg %p118
      %p232 = pneg %p115
      %p233 = pneg %p144
      %p234 = pneg %p141
      %p235 = scmp.lt.s32.totalorder %s29, 17
      %s236 = scalar_select %p235, %s29, 17
      %s237 = smul.addr %s236, 8
      %s238 = scalar_lea.vmem %s5, %s237
      %p239 = scmp.lt.s32.totalorder %s29, 17
      %s240 = scalar_select %p239, %s29, 17
      %s241 = smul.addr %s240, 8
      %s242 = scalar_lea.vmem %s2, %s241
      %s243 = sld [smem:[#allocation4 + %s29]]
      %p244 = scmp.lt.s32.totalorder %s243, 9
      %s245 = scalar_select %p244, %s243, 9
      %p246 = scmp.lt.s32.totalorder %s30, 0
      %s247 = scalar_select %p246, %s30, 0
      %s248 = smul.addr %s247, 8
      %s249 = smul.addr %s245, 8
      %s250 = sadd.s32 %s248, %s249
      %s251 = smul.addr %s250, 8
      %s252 = scalar_lea.vmem %s3, %s251
      %s253 = sld [smem:[#allocation4 + %s29]]
      %s254 = sld [smem:[#allocation4 + %s29]]
      %p255 = scmp.lt.s32.totalorder %s254, 9
      %s256 = scalar_select %p255, %s254, 9
      %p257 = scmp.lt.s32.totalorder %s30, 0
      %s258 = scalar_select %p257, %s30, 0
      %s259 = smul.addr %s256, 4
      %s260 = sadd.s32 %s258, %s259
      %s261 = smul.addr %s260, 8
      %s262 = scalar_lea.vmem %s4, %s261
      %s263 = sld [smem:[#allocation4 + %s29]]
      %p264 = scmp.lt.s32.totalorder %s29, 17
      %s265 = scalar_select %p264, %s29, 17
      %s266 = smul.addr %s265, 8
      %s267 = scalar_lea.vmem %s5, %s266
      %p268 = scmp.eq.s32.totalorder %s30, 0
      // Predicated region
      $region33: #{moe_forward.1} parent=31 // pred_check
        %p269 = pneg %p268
      $region34: #{moe_forward.1} parent=31 // pred_check_branch
        %271 = sbr.rel (%p269) target = $region36
      $region35: #{moe_forward.1} parent=31 // pred_region
        %vm272 = vcmask 261120
        %273 = vst.msk [vmem:[#allocation2] sm:$0xff] %vm272, 0.0
      $region36: #{moe_forward.1} parent=31 // pred_fallthru
        _
      %s274 = sld [smem:[#allocation5]]
      %p275 = scmp.lt.s32.totalorder %s29, %s274
      // Predicated region
      $region37: #{moe_forward.1} parent=31 // pred_check
        %p276 = pneg %p275
      $region38: #{moe_forward.1} parent=31 // pred_check_branch
        %278 = sbr.rel (%p276) target = $region40
      $region39: #{moe_forward.1} parent=31 // pred_region
        %v279 = vld [vmem:[%s242] sm:$0xff]
        %v280 = vld [vmem:[%s252] sm:$0xff]
        %v281 = vld [vmem:[%s252 + $0x8] sm:$0xff]
        %v282 = vld [vmem:[%s252 + $0x10] sm:$0xff]
        %v283 = vld [vmem:[%s252 + $0x18] sm:$0xff]
        %v284 = vld [vmem:[%s252 + $0x20] sm:$0xff]
        %v285 = vld [vmem:[%s252 + $0x28] sm:$0xff]
        %v286 = vld [vmem:[%s252 + $0x30] sm:$0xff]
        %v287 = vld [vmem:[%s252 + $0x38] sm:$0xff]
        %vm288 = vcmask 261120
        %v290 = vsel %vm288, %v279, 0
        %v293 = vsel %vm288, %v280, 0
        %v296 = vsel %vm288, %v281, 0
        %v299 = vsel %vm288, %v282, 0
        %v302 = vsel %vm288, %v283, 0
        %v305 = vsel %vm288, %v284, 0
        %v308 = vsel %vm288, %v285, 0
        %v311 = vsel %vm288, %v286, 0
        %v314 = vsel %vm288, %v287, 0
        %316 = vmatpush.xpose.msra.mxu0 0.0
        %317 = vmatpush.xpose.msra.mxu0 0.0
        %318 = vmatpush.xpose.msra.mxu0 0.0
        %319 = vmatpush.xpose.msra.mxu0 0.0
        %320 = vmatpush.xpose.msra.mxu0 0.0
        %321 = vmatpush.xpose.msra.mxu0 0.0
        %322 = vmatpush.xpose.msra.mxu0 0.0
        %323 = vmatpush.xpose.msra.mxu0 0.0
        %324 = vmatpush.xpose.msra.mxu0 %v314
        %325 = vmatpush.xpose.msra.mxu0 %v311
        %326 = vmatpush.xpose.msra.mxu0 %v308
        %327 = vmatpush.xpose.msra.mxu0 %v305
        %328 = vmatpush.xpose.msra.mxu0 %v302
        %329 = vmatpush.xpose.msra.mxu0 %v299
        %330 = vmatpush.xpose.msra.mxu0 %v296
        %331 = vmatpush.xpose.msra.mxu0 %v293
        %332 = vmatmul.f32.gmra.mxu0 %v290
        %v333 = vpop.f32.mrf.mxu0
        %v334 = vadd.f32 0.0, %v333
        %335 = vdwg.mxu0
        %v336 = vxor.u32 %v334, 2147483648
        %v337 = vmul.f32 %v336, 1.442695
        %v338 = vpow.pop %v337
        %v339 = vadd.f32 %v338, 1.0
        %v340 = vrcp.pop %v339
        %v341 = vmul.f32 %v339, %v340
        %v342 = vsub.f32 1.0, %v341
        %v343 = vmul.f32 %v340, %v342
        %v344 = vadd.f32 %v340, %v343
        %vm345 = vweird.f32 %v339
        %vm346 = vweird.f32 %v340
        %vm347 = vmor %vm345, %vm346
        %v348 = vsel %vm347, %v340, %v344
        %v349 = vand.u32 2147483647, %v339
        %vm350 = vcmp.eq.f32.partialorder %v349, 8.507059e+37
        %v351 = vand.u32 %v339, 2147483648
        %v352 = vor.u32 1.1754944e-38, %v351
        %v353 = vsel %vm350, %v352, %v348
        %v354 = vmul.f32 1.0, %v353
        %v355 = vmul.f32 %v334, %v354
        %357 = vrot.lane.b32.xlu0 %v334, 96
        %v358 = vpop.permute.xlu0 %357
        %v360 = vmul.f32 %v355, %v358
        %v361 = vld [vmem:[%s262] sm:$0xff]
        %v362 = vld [vmem:[%s262 + $0x8] sm:$0xff]
        %v363 = vld [vmem:[%s262 + $0x10] sm:$0xff]
        %v364 = vld [vmem:[%s262 + $0x18] sm:$0xff]
        %v365 = vld [vmem:[#allocation2] sm:$0xff]
        %v367 = vsel %vm288, %v360, 0
        %v370 = vsel %vm288, %v361, 0
        %v373 = vsel %vm288, %v362, 0
        %v376 = vsel %vm288, %v363, 0
        %v379 = vsel %vm288, %v364, 0
        %381 = vmatpush.xpose.msra.mxu0 0.0
        %382 = vmatpush.xpose.msra.mxu0 0.0
        %383 = vmatpush.xpose.msra.mxu0 0.0
        %384 = vmatpush.xpose.msra.mxu0 0.0
        %385 = vmatpush.xpose.msra.mxu0 0.0
        %386 = vmatpush.xpose.msra.mxu0 0.0
        %387 = vmatpush.xpose.msra.mxu0 0.0
        %388 = vmatpush.xpose.msra.mxu0 0.0
        %389 = vmatpush.xpose.msra.mxu0 0.0
        %390 = vmatpush.xpose.msra.mxu0 0.0
        %391 = vmatpush.xpose.msra.mxu0 0.0
        %392 = vmatpush.xpose.msra.mxu0 0.0
        %393 = vmatpush.xpose.msra.mxu0 %v379
        %394 = vmatpush.xpose.msra.mxu0 %v376
        %395 = vmatpush.xpose.msra.mxu0 %v373
        %396 = vmatpush.xpose.msra.mxu0 %v370
        %397 = vmatmul.f32.gmra.mxu0 %v367
        %v398 = vpop.f32.mrf.mxu0
        %v399 = vadd.f32 0.0, %v398
        %400 = vdwg.mxu0
        %v401 = vadd.f32 %v365, %v399
        %402 = vst.msk [vmem:[#allocation2] sm:$0xff] %vm288, %v401
      $region40: #{moe_forward.1} parent=31 // pred_fallthru
        _
      // Predicated region
      $region41: #{moe_forward.1} parent=31 // pred_check
        %p403 = pneg %p268
      $region42: #{moe_forward.1} parent=31 // pred_check_branch
        %405 = sbr.rel (%p403) target = $region44
      $region43: #{moe_forward.1} parent=31 // pred_region
        %v406 = vld [vmem:[#allocation2] sm:$0xff]
        %vm407 = vcmask 261120
        %408 = vst.msk [vmem:[%s267] sm:$0xff] %vm407, %v406
      $region44: #{moe_forward.1} parent=31 // pred_fallthru
        _
      %p409 = scmp.lt.s32.totalorder %s29, 17
      %s410 = scalar_select %p409, %s29, 17
      %s411 = smul.addr %s410, 8
      %s412 = scalar_lea.vmem %s5, %s411
      // Predicated region
      $region45: #{moe_forward.1} parent=31 // pred_check
        %p413 = pneg %p141
      $region46: #{moe_forward.1} parent=31 // pred_check_branch
        %415 = sbr.rel (%p413) target = $region48
      $region47: #{moe_forward.1} parent=31 // pred_region
        _
      $region48: #{moe_forward.1} parent=31 // pred_fallthru
        _
    $region32: #{moe_forward.1} parent=5 // pred_fallthru
      _
    %p416 = scmp.le.s32.totalorder 2, %s20
    // Predicated region
    $region49: #{moe_forward.1} parent=5 // pred_check
      %p417 = pneg %p416
    $region50: #{moe_forward.1} parent=5 // pred_check_branch
      %419 = sbr.rel (%p417) target = $region52
    $region51: #{moe_forward.1} parent=5 // pred_region
      %s420 = ssub.s32 %s20, 2
      // Predicated region
      $region53: #{moe_forward.1} parent=51 // pred_check
        %p421 = pneg %p147
      $region54: #{moe_forward.1} parent=51 // pred_check_branch
        %423 = sbr.rel (%p421) target = $region56
      $region55: #{moe_forward.1} parent=51 // pred_region
        %p424 = scmp.lt.s32.totalorder %s31, 17
        %s425 = scalar_select %p424, %s31, 17
        %s426 = smul.addr %s425, 8
        %s427 = scalar_lea.vmem %s5, %s426
      $region56: #{moe_forward.1} parent=51 // pred_fallthru
        _
    $region52: #{moe_forward.1} parent=5 // pred_fallthru
      _
  $region6: #{moe_forward.1} parent=0 // loop_footer
    %s24 = sadd.s32 1, %s20
  $region7: #{moe_forward.1} parent=0 // loop_footer_branch
    %19 = sbr.rel target = $region3
  $region8: #{moe_forward.1} parent=0 // loop_exit
    _

</llo_original>
